<compile_context>
chip_gen: v7x
topology: tpu7x:2x2x1
jax: 0.10.0
libtpu: 0.0.40
codegen_flags: <defaults>
</compile_context>

<pallas_src>
import jax
import jax.numpy as jnp
import numpy as np
from jax.experimental import pallas as pl
from jax.experimental.pallas import tpu as pltpu

LANE = 128  # TPU lane width


def _round_up(x, m):
    return (x + m - 1) // m * m


def _critic_kernel(x_ref, w1_ref, b1_ref, w2_ref, b2_ref, w3_ref, b3_ref, out_ref):
    """One batch tile: Linear -> tanh -> Linear -> tanh -> Linear(64,1) as a row."""
    # Cast obs to the compute dtype in-kernel (free VPU op hidden under the
    # obs DMA) instead of a separate full-HBM-pass cast in the wrapper.
    x = x_ref[...].astype(w1_ref.dtype)

    h = jnp.tanh(
        jnp.dot(x, w1_ref[...], preferred_element_type=jnp.float32) + b1_ref[...]
    )
    h = h.astype(w2_ref.dtype)

    h = jnp.tanh(
        jnp.dot(h, w2_ref[...], preferred_element_type=jnp.float32) + b2_ref[...]
    )
    h = h.astype(w3_ref.dtype)

    # Final Linear(H2 -> 1) computed directly in (1, bm) row orientation:
    # (1, H2) x (bm, H2)^T -> (1, bm).  Output stays lane-dense and tiny.
    v = jax.lax.dot_general(
        w3_ref[...],
        h,
        dimension_numbers=(((1,), (1,)), ((), ())),
        preferred_element_type=jnp.float32,
    ) + b3_ref[...]

    out_ref[...] = v[None].astype(out_ref.dtype)  # (1, 1, bm)


def critic_forward(obs, params, *, block_m=2048, compute_dtype=jnp.float32):
    """Critic forward. obs: (B, obs_dim). Returns value estimates of shape (B,)."""
    B, D = obs.shape

    w1 = params["w1"].astype(compute_dtype)
    w2 = params["w2"].astype(compute_dtype)
    w3 = params["w3_row"].astype(compute_dtype)  # (1, H2), pre-transposed
    b1 = params["b1"]                            # biases stay f32
    b2 = params["b2"]
    b3 = params["b3"]                            # (1, 1)

    H1 = w1.shape[1]
    H2 = w2.shape[1]

    # --- batch tile selection ---------------------------------------------
    Bp8 = _round_up(B, 8)
    bm = min(block_m, Bp8)
    if Bp8 >= 2 * LANE:
        # Large batch: cap the tile so the parallel grid has >= 2 steps
        # (shards across v7x's two TensorCores) and keep output rows a
        # multiple of 128 lanes for unmasked stores.
        bm = min(bm, _round_up((Bp8 + 1) // 2, LANE))
    bm = max(8, _round_up(bm, 8))
    num_tiles = (B + bm - 1) // bm  # ragged last input block handled by Pallas

    rep = lambda i: (0, 0)  # weights/biases: same (only) block every grid step

    itemsize = int(jnp.dtype(obs.dtype).itemsize)
    cost = pl.CostEstimate(
        flops=int(2 * B * (D * H1 + H1 * H2 + H2)),
        transcendentals=int(B * (H1 + H2)),
        bytes_accessed=int(
            B * (D * itemsize + 4) + 4 * (D * H1 + H1 + H1 * H2 + H2 + H2 + 1)
        ),
    )

    out = pl.pallas_call(
        _critic_kernel,
        out_shape=jax.ShapeDtypeStruct((num_tiles, 1, bm), jnp.float32),
        grid_spec=pltpu.PrefetchScalarGridSpec(
            num_scalar_prefetch=0,
            grid=(num_tiles,),
            in_specs=[
                pl.BlockSpec((bm, D), lambda i: (i, 0)),   # obs tile (streamed)
                pl.BlockSpec((D, H1), rep),                # w1 (VMEM-resident)
                pl.BlockSpec((1, H1), rep),                # b1
                pl.BlockSpec((H1, H2), rep),               # w2
                pl.BlockSpec((1, H2), rep),                # b2
                pl.BlockSpec((1, H2), rep),                # w3 row
                pl.BlockSpec((1, 1), rep),                 # b3
            ],
            out_specs=pl.BlockSpec((1, 1, bm), lambda i: (i, 0, 0)),
        ),
        compiler_params=pltpu.CompilerParams(
            dimension_semantics=("parallel",),
        ),
        cost_estimate=cost,
    )(obs, w1, b1, w2, b2, w3, b3)

    # (num_tiles, 1, bm) -> flat values; padded tail rows are discarded.
    return out.reshape(-1)[:B]  # squeeze(-1): value estimates, shape (B,)


def make_params(key, obs_dim, hidden=(64, 64)):
    """Orthogonal(gain=sqrt(2)) weights, zero biases (mirrors init_weights).

    Weights are stored pre-transposed as (in_features, out_features); the final
    layer is additionally stored as a (1, H2) row for the kernel's trans_b
    matmul (built once here, not per call).
    """
    ortho = jax.nn.initializers.orthogonal(scale=float(np.sqrt(2.0)))
    k1, k2, k3 = jax.random.split(key, 3)
    h1, h2 = hidden

    w3 = ortho(k3, (h2, 1), jnp.float32)

    return {
        "w1": ortho(k1, (obs_dim, h1), jnp.float32),
        "b1": jnp.zeros((1, h1), jnp.float32),
        "w2": ortho(k2, (h1, h2), jnp.float32),
        "b2": jnp.zeros((1, h2), jnp.float32),
        "w3": w3,                 # (h2, 1) — reference layout
        "w3_row": w3.T,           # (1, h2) — kernel layout
        "b3": jnp.zeros((1, 1), jnp.float32),
    }


def _reference_forward(obs, p):
    """Pure-JAX reference matching the PyTorch Critic forward."""
    h = jnp.tanh(obs @ p["w1"] + p["b1"])
    h = jnp.tanh(h @ p["w2"] + p["b2"])
    return (h @ p["w3"] + p["b3"]).reshape(-1)


if __name__ == "__main__":
    OBS_DIM = 8

    key = jax.random.PRNGKey(0)
    k_params, k1, k2, k3 = jax.random.split(key, 4)
    params = make_params(k_params, OBS_DIM)

    fwd = jax.jit(critic_forward, static_argnames=("block_m", "compute_dtype"))

    # --- small batch, f32 ---
    B = 8
    obs = jax.random.normal(k1, (B, OBS_DIM), dtype=jnp.float32)
    value = jax.block_until_ready(fwd(obs, params))
    ref = _reference_forward(obs, params)
    assert value.shape == (B,)
    np.testing.assert_allclose(np.asarray(value), np.asarray(ref), atol=1e-4, rtol=1e-4)

    # --- non-multiple-of-tile batch with a multi-step grid (ragged last block) ---
    B2 = 20
    obs2 = jax.random.normal(k2, (B2, OBS_DIM), dtype=jnp.float32)
    value2 = jax.block_until_ready(fwd(obs2, params, block_m=8))
    ref2 = _reference_forward(obs2, params)
    assert value2.shape == (B2,)
    np.testing.assert_allclose(np.asarray(value2), np.asarray(ref2), atol=1e-4, rtol=1e-4)

    # --- larger batch: >=2 parallel grid steps, lane-dense 128-multiple rows ---
    B3 = 300
    obs3 = jax.random.normal(k3, (B3, OBS_DIM), dtype=jnp.float32)
    value3 = jax.block_until_ready(fwd(obs3, params))
    ref3 = _reference_forward(obs3, params)
    assert value3.shape == (B3,)
    np.testing.assert_allclose(np.asarray(value3), np.asarray(ref3), atol=1e-4, rtol=1e-4)

    # --- bf16 compute path (f32 accumulation + f32 tanh), loose tolerance ---
    value_bf16 = jax.block_until_ready(fwd(obs, params, compute_dtype=jnp.bfloat16))
    np.testing.assert_allclose(
        np.asarray(value_bf16), np.asarray(ref), atol=5e-2, rtol=5e-2
    )

    print("KERNEL_OK")
</pallas_src>

<mosaic_0001>
module attributes {stable_mosaic.version = 11 : i64} {
  func.func @_critic_kernel(%arg0: i32, %arg1: memref<8x8xf32, #tpu.memory_space<vmem>>, %arg2: memref<8x64xf32, #tpu.memory_space<vmem>>, %arg3: memref<1x64xf32, #tpu.memory_space<vmem>>, %arg4: memref<64x64xf32, #tpu.memory_space<vmem>>, %arg5: memref<1x64xf32, #tpu.memory_space<vmem>>, %arg6: memref<1x64xf32, #tpu.memory_space<vmem>>, %arg7: memref<1x1xf32, #tpu.memory_space<vmem>>, %arg8: memref<1x1x8xf32, #tpu.memory_space<vmem>>) attributes {dimension_semantics = [#tpu.dimension_semantics<parallel>], iteration_bounds = array<i64: 1>, scalar_prefetch = 0 : i64, scratch_operands = 0 : i64, tpu.core_type = #tpu.core_type<tc>, window_params = [{transform_indices = @transform_0, window_bounds = array<i64: 8, 8>}, {pipeline_mode = #tpu.pipeline_mode<synchronous>, transform_indices = @transform_1, window_bounds = array<i64: 8, 64>}, {pipeline_mode = #tpu.pipeline_mode<synchronous>, transform_indices = @transform_2, window_bounds = array<i64: 1, 64>}, {pipeline_mode = #tpu.pipeline_mode<synchronous>, transform_indices = @transform_3, window_bounds = array<i64: 64, 64>}, {pipeline_mode = #tpu.pipeline_mode<synchronous>, transform_indices = @transform_4, window_bounds = array<i64: 1, 64>}, {pipeline_mode = #tpu.pipeline_mode<synchronous>, transform_indices = @transform_5, window_bounds = array<i64: 1, 64>}, {pipeline_mode = #tpu.pipeline_mode<synchronous>, transform_indices = @transform_6, window_bounds = array<i64: 1, 1>}, {transform_indices = @transform_7, window_bounds = array<i64: 1, 1, 8>}]} {
    %c0 = arith.constant 0 : index
    %c0_0 = arith.constant 0 : index
    %0 = vector.load %arg1[%c0, %c0_0] : memref<8x8xf32, #tpu.memory_space<vmem>>, vector<8x8xf32>
    %c0_1 = arith.constant 0 : index
    %c0_2 = arith.constant 0 : index
    %1 = vector.load %arg2[%c0_1, %c0_2] : memref<8x64xf32, #tpu.memory_space<vmem>>, vector<8x64xf32>
    %cst = arith.constant dense<0.000000e+00> : vector<8x64xf32>
    %2 = tpu.matmul %0, %1, %cst {dimension_numbers = #tpu.dot_dimension_numbers<[1], [0], [0], [1], [0, 0, 1, 1], [], []>} : vector<8x8xf32>, vector<8x64xf32>, vector<8x64xf32> -> vector<8x64xf32>
    %c0_3 = arith.constant 0 : index
    %c0_4 = arith.constant 0 : index
    %3 = vector.load %arg3[%c0_3, %c0_4] : memref<1x64xf32, #tpu.memory_space<vmem>>, vector<1x64xf32>
    %4 = vector.broadcast %3 : vector<1x64xf32> to vector<8x64xf32>
    %5 = arith.addf %2, %4 : vector<8x64xf32>
    %6 = math.tanh %5 : vector<8x64xf32>
    %c0_5 = arith.constant 0 : index
    %c0_6 = arith.constant 0 : index
    %7 = vector.load %arg4[%c0_5, %c0_6] : memref<64x64xf32, #tpu.memory_space<vmem>>, vector<64x64xf32>
    %cst_7 = arith.constant dense<0.000000e+00> : vector<8x64xf32>
    %8 = tpu.matmul %6, %7, %cst_7 {dimension_numbers = #tpu.dot_dimension_numbers<[1], [0], [0], [1], [0, 0, 1, 1], [], []>} : vector<8x64xf32>, vector<64x64xf32>, vector<8x64xf32> -> vector<8x64xf32>
    %c0_8 = arith.constant 0 : index
    %c0_9 = arith.constant 0 : index
    %9 = vector.load %arg5[%c0_8, %c0_9] : memref<1x64xf32, #tpu.memory_space<vmem>>, vector<1x64xf32>
    %10 = vector.broadcast %9 : vector<1x64xf32> to vector<8x64xf32>
    %11 = arith.addf %8, %10 : vector<8x64xf32>
    %12 = math.tanh %11 : vector<8x64xf32>
    %c0_10 = arith.constant 0 : index
    %c0_11 = arith.constant 0 : index
    %13 = vector.load %arg6[%c0_10, %c0_11] : memref<1x64xf32, #tpu.memory_space<vmem>>, vector<1x64xf32>
    %cst_12 = arith.constant dense<0.000000e+00> : vector<1x8xf32>
    %14 = tpu.matmul %13, %12, %cst_12 {dimension_numbers = #tpu.dot_dimension_numbers<[1], [1], [0], [0], [0, 0, 1, 0], [], []>} : vector<1x64xf32>, vector<8x64xf32>, vector<1x8xf32> -> vector<1x8xf32>
    %c0_13 = arith.constant 0 : index
    %c0_14 = arith.constant 0 : index
    %15 = vector.load %arg7[%c0_13, %c0_14] : memref<1x1xf32, #tpu.memory_space<vmem>>, vector<1x1xf32>
    %16 = vector.broadcast %15 : vector<1x1xf32> to vector<1x8xf32>
    %17 = arith.addf %14, %16 : vector<1x8xf32>
    %18 = vector.shape_cast %17 : vector<1x8xf32> to vector<1x1x8xf32>
    %c0_15 = arith.constant 0 : index
    %c0_16 = arith.constant 0 : index
    %c0_17 = arith.constant 0 : index
    %19 = vector.load %arg8[%c0_15, %c0_16, %c0_17] : memref<1x1x8xf32, #tpu.memory_space<vmem>>, vector<1x1x8xf32>
    tpu.vector_store %arg8[%c0_15, %c0_16, %c0_17], %18 {strides = array<i32>} : memref<1x1x8xf32, #tpu.memory_space<vmem>>, vector<1x1x8xf32>,
    return
  }
  func.func @transform_0(%arg0: i32) -> (i32, i32) {
    %c0_i32 = arith.constant 0 : i32
    %c0_i32_0 = arith.constant 0 : i32
    return %arg0, %c0_i32 : i32, i32
  }
  func.func @transform_1(%arg0: i32) -> (i32, i32) {
    %c0_i32 = arith.constant 0 : i32
    %c0_i32_0 = arith.constant 0 : i32
    %c0_i32_1 = arith.constant 0 : i32
    return %c0_i32, %c0_i32_0 : i32, i32
  }
  func.func @transform_2(%arg0: i32) -> (i32, i32) {
    %c0_i32 = arith.constant 0 : i32
    %c0_i32_0 = arith.constant 0 : i32
    %c0_i32_1 = arith.constant 0 : i32
    return %c0_i32, %c0_i32_0 : i32, i32
  }
  func.func @transform_3(%arg0: i32) -> (i32, i32) {
    %c0_i32 = arith.constant 0 : i32
    %c0_i32_0 = arith.constant 0 : i32
    %c0_i32_1 = arith.constant 0 : i32
    return %c0_i32, %c0_i32_0 : i32, i32
  }
  func.func @transform_4(%arg0: i32) -> (i32, i32) {
    %c0_i32 = arith.constant 0 : i32
    %c0_i32_0 = arith.constant 0 : i32
    %c0_i32_1 = arith.constant 0 : i32
    return %c0_i32, %c0_i32_0 : i32, i32
  }
  func.func @transform_5(%arg0: i32) -> (i32, i32) {
    %c0_i32 = arith.constant 0 : i32
    %c0_i32_0 = arith.constant 0 : i32
    %c0_i32_1 = arith.constant 0 : i32
    return %c0_i32, %c0_i32_0 : i32, i32
  }
  func.func @transform_6(%arg0: i32) -> (i32, i32) {
    %c0_i32 = arith.constant 0 : i32
    %c0_i32_0 = arith.constant 0 : i32
    %c0_i32_1 = arith.constant 0 : i32
    return %c0_i32, %c0_i32_0 : i32, i32
  }
  func.func @transform_7(%arg0: i32) -> (i32, i32, i32) {
    %c0_i32 = arith.constant 0 : i32
    %c0_i32_0 = arith.constant 0 : i32
    %c0_i32_1 = arith.constant 0 : i32
    return %arg0, %c0_i32, %c0_i32_0 : i32, i32, i32
  }
}

</mosaic_0001>

<llo_original>
// kernel: critic_forward.1
$region0: #{critic_forward.1}
  #allocation0 [shape = 'u32[]', space=smem, size = 0x4, offset = 0x4, fixed_abs, tag = 'smem constant byte address 0x4 - core index']
  #allocation1 [shape = 'u32[144,128]{1,0:T(1,128)}', space=vmem, size = 0x12000, scoped, tag = 'internal scratch']
  #allocation2 [shape = 'f32[1,1]{1,0:T(1,128)S(1)}', space=vmem, size = 0x200, scoped, tag = 'scoped memory for critic_forward.1']
  %s0 = inlined_call_operand.hbm [shape: f32[8,8], index: 0, kind: input, shape index: {}]
  %s1 = inlined_call_operand.vmem [shape: f32[8,64], index: 1, kind: input, shape index: {}]
  %s2 = inlined_call_operand.vmem [shape: f32[1,64], index: 2, kind: input, shape index: {}]
  %s3 = inlined_call_operand.hbm [shape: f32[64,64], index: 3, kind: input, shape index: {}]
  %s4 = inlined_call_operand.vmem [shape: f32[1,64], index: 4, kind: input, shape index: {}]
  %s5 = inlined_call_operand.vmem [shape: f32[1,64], index: 5, kind: input, shape index: {}]
  %s6 = inlined_call_operand.<no memory space> [shape: f32[1,1], index: 6, kind: input, shape index: {}]
  %s7 = inlined_call_operand.hbm [shape: f32[1,1,8], index: 7, kind: output, shape index: {}]
  %s8 = sld [smem:[#allocation0]]
  $region46: #{critic_forward.1} parent=0
    _
  %s10 = ssub.s32 1, %s8
  %s11 = scalar_select 0, %s10, %s8
  %v12 = vstv %s6
  %13 = vst [vmem:[#allocation2] sm:$0x1] %v12
  $region1: #{critic_forward.1} parent=0
    #allocation3 [shape = 'u8[4096]{0}', space=vmem, size = 0x1000, scoped, tag = 'input window, operand 0, single buffered']
    #allocation4 [shape = 's32[1]{0}', space=sflag, size = 0x4, scoped, tag = 'scoped memory for critic_forward.1']
    #allocation5 [shape = 's32[1]{0}', space=sflag, size = 0x4, scoped, tag = 'scoped memory for critic_forward.1']
    #allocation6 [shape = 'u8[32768]{0}', space=vmem, size = 0x8000, scoped, tag = 'input window, operand 3, single buffered']
    #allocation7 [shape = 's32[1]{0}', space=sflag, size = 0x4, scoped, tag = 'scoped memory for critic_forward.1']
    #allocation8 [shape = 'u8[512]{0}', space=vmem, size = 0x400, scoped, tag = 'output window, operand 0, single buffered']
    %14 = vsyncpa [#allocation4], 0
    %15 = vsyncpa [#allocation7], 0
    %16 = vsyncpa [#allocation5], 0
    // Predicated region
    $region2: #{critic_forward.1} parent=1 // pred_check
      _
    $region3: #{critic_forward.1} parent=1 // pred_check_branch
      %18 = sbr.rel (0) target = $region5
    $region4: #{critic_forward.1} parent=1 // pred_region
      %s20 = ssub.s32 128, 128
      %21 = vsyncadd [#allocation4], %s20
      %s23 = sshll.u32 [#allocation3], 4
      %s24 = int_to_ptr.vmem [resolvable:$true] %s23
      %26 = dma.hbm_to_vmem [thread:$0]  %s0, 128, %s24, [#allocation4]
    $region5: #{critic_forward.1} parent=1 // pred_fallthru
      _
    // Predicated region
    $region6: #{critic_forward.1} parent=1 // pred_check
      _
    $region7: #{critic_forward.1} parent=1 // pred_check_branch
      %28 = sbr.rel (0) target = $region9
    $region8: #{critic_forward.1} parent=1 // pred_region
      _
    $region9: #{critic_forward.1} parent=1 // pred_fallthru
      _
    // Predicated region
    $region10: #{critic_forward.1} parent=1 // pred_check
      _
    $region11: #{critic_forward.1} parent=1 // pred_check_branch
      %30 = sbr.rel (0) target = $region13
    $region12: #{critic_forward.1} parent=1 // pred_region
      _
    $region13: #{critic_forward.1} parent=1 // pred_fallthru
      _
    // Predicated region
    $region14: #{critic_forward.1} parent=1 // pred_check
      _
    $region15: #{critic_forward.1} parent=1 // pred_check_branch
      %32 = sbr.rel (0) target = $region17
    $region16: #{critic_forward.1} parent=1 // pred_region
      %s34 = ssub.s32 1024, 1024
      %35 = vsyncadd [#allocation7], %s34
      %s36 = sshll.u32 [#allocation6], 4
      %s37 = int_to_ptr.vmem [resolvable:$true] %s36
      %42 = dma.hbm_to_vmem [thread:$0]  %s3, 1024, %s37, [#allocation7], 128, 128, 8
    $region17: #{critic_forward.1} parent=1 // pred_fallthru
      _
    // Predicated region
    $region18: #{critic_forward.1} parent=1 // pred_check
      _
    $region19: #{critic_forward.1} parent=1 // pred_check_branch
      %44 = sbr.rel (0) target = $region21
    $region20: #{critic_forward.1} parent=1 // pred_region
      _
    $region21: #{critic_forward.1} parent=1 // pred_fallthru
      _
    // Predicated region
    $region22: #{critic_forward.1} parent=1 // pred_check
      _
    $region23: #{critic_forward.1} parent=1 // pred_check_branch
      %46 = sbr.rel (0) target = $region25
    $region24: #{critic_forward.1} parent=1 // pred_region
      _
    $region25: #{critic_forward.1} parent=1 // pred_fallthru
      _
    // Predicated region
    $region26: #{critic_forward.1} parent=1 // pred_check
      _
    $region27: #{critic_forward.1} parent=1 // pred_check_branch
      %48 = sbr.rel (0) target = $region29
    $region28: #{critic_forward.1} parent=1 // pred_region
      _
    $region29: #{critic_forward.1} parent=1 // pred_fallthru
      _
    // Predicated region
    $region30: #{critic_forward.1} parent=1 // pred_check
      _
    $region31: #{critic_forward.1} parent=1 // pred_check_branch
      %50 = sbr.rel (0) target = $region33
    $region32: #{critic_forward.1} parent=1 // pred_region
      %51 = dma.done [#allocation4], 128
    $region33: #{critic_forward.1} parent=1 // pred_fallthru
      _
    // Predicated region
    $region34: #{critic_forward.1} parent=1 // pred_check
      _
    $region35: #{critic_forward.1} parent=1 // pred_check_branch
      %53 = sbr.rel (0) target = $region37
    $region36: #{critic_forward.1} parent=1 // pred_region
      %54 = dma.done [#allocation7], 1024
    $region37: #{critic_forward.1} parent=1 // pred_fallthru
      _
    %v55 = vld [vmem:[#allocation3] sm:$0xff]
    %v56 = vld [vmem:[%s1] sm:$0xff]
    %v57 = vld [vmem:[%s2] sm:$0x1]
    %v59 = vlaneseq
    %v60 = vshrl.u32 %v59, 7
    %v61 = vsub.s32 0, %v60
    %v62 = vrot.slane %v57, %v61
    %vm64 = vcmask 64512
    %v66 = vsel %vm64, %v55, 0
    %68 = vmatprep.subr.mxu0 0.0
    %69 = vmatpush1.msra.mxu0 %v56
    %70 = vmatprep.subr.mxu0 0.0
    %71 = vmatpush1.msra.mxu0 0.0
    %72 = vmatprep.subr.mxu0 0.0
    %73 = vmatpush1.msra.mxu0 0.0
    %74 = vmatprep.subr.mxu0 0.0
    %75 = vmatpush1.msra.mxu0 0.0
    %76 = vmatprep.subr.mxu0 0.0
    %77 = vmatpush1.msra.mxu0 0.0
    %78 = vmatprep.subr.mxu0 0.0
    %79 = vmatpush1.msra.mxu0 0.0
    %80 = vmatprep.subr.mxu0 0.0
    %81 = vmatpush1.msra.mxu0 0.0
    %82 = vmatprep.subr.mxu0 0.0
    %83 = vmatpush1.msra.mxu0 0.0
    %84 = vmatprep.subr.mxu0 0.0
    %85 = vmatpush1.msra.mxu0 0.0
    %86 = vmatprep.subr.mxu0 0.0
    %87 = vmatpush1.msra.mxu0 0.0
    %88 = vmatprep.subr.mxu0 0.0
    %89 = vmatpush1.msra.mxu0 0.0
    %90 = vmatprep.subr.mxu0 0.0
    %91 = vmatpush1.msra.mxu0 0.0
    %92 = vmatprep.subr.mxu0 0.0
    %93 = vmatpush1.msra.mxu0 0.0
    %94 = vmatprep.subr.mxu0 0.0
    %95 = vmatpush1.msra.mxu0 0.0
    %96 = vmatprep.subr.mxu0 0.0
    %97 = vmatpush1.msra.mxu0 0.0
    %98 = vmatprep.subr.mxu0 0.0
    %99 = vmatpush1.msra.mxu0 0.0
    %100 = vmatprep.subr.mxu0 0.0
    %101 = vmatpush1.msra.mxu0 0.0
    %102 = vmatprep.subr.mxu0 0.0
    %103 = vmatpush1.msra.mxu0 0.0
    %104 = vmatprep.subr.mxu0 0.0
    %105 = vmatpush1.msra.mxu0 0.0
    %106 = vmatprep.subr.mxu0 0.0
    %107 = vmatpush1.msra.mxu0 0.0
    %108 = vmatprep.subr.mxu0 0.0
    %109 = vmatpush1.msra.mxu0 0.0
    %110 = vmatprep.subr.mxu0 0.0
    %111 = vmatpush1.msra.mxu0 0.0
    %112 = vmatprep.subr.mxu0 0.0
    %113 = vmatpush1.msra.mxu0 0.0
    %114 = vmatprep.subr.mxu0 0.0
    %115 = vmatpush1.msra.mxu0 0.0
    %116 = vmatprep.subr.mxu0 0.0
    %117 = vmatpush1.msra.mxu0 0.0
    %118 = vmatprep.subr.mxu0 0.0
    %119 = vmatpush1.msra.mxu0 0.0
    %120 = vmatprep.subr.mxu0 0.0
    %121 = vmatpush1.msra.mxu0 0.0
    %122 = vmatprep.subr.mxu0 0.0
    %123 = vmatpush1.msra.mxu0 0.0
    %124 = vmatprep.subr.mxu0 0.0
    %125 = vmatpush1.msra.mxu0 0.0
    %126 = vmatprep.subr.mxu0 0.0
    %127 = vmatpush1.msra.mxu0 0.0
    %128 = vmatprep.subr.mxu0 0.0
    %129 = vmatpush1.msra.mxu0 0.0
    %130 = vmatprep.subr.mxu0 0.0
    %131 = vmatpush1.msra.mxu0 0.0
    %132 = vmatprep.mubr.f32.mxu0 0.0
    %133 = vmatmul.mubr.f32.gmra.mrb[0].mxu0 %v66
    %v134 = vpop.f32.mrb[0].mxu0
    %v135 = vadd.f32 %v62, %v134
    %v136 = vpop.f32.mrb[0].mxu0
    %137 = vdwg.mxu0
    %v138 = vtanh.pop %v135
    %v139 = vld [vmem:[#allocation6] sm:$0xff]
    %v140 = vld [vmem:[#allocation6 + $0x8] sm:$0xff]
    %v141 = vld [vmem:[#allocation6 + $0x10] sm:$0xff]
    %v142 = vld [vmem:[#allocation6 + $0x18] sm:$0xff]
    %v143 = vld [vmem:[#allocation6 + $0x20] sm:$0xff]
    %v144 = vld [vmem:[#allocation6 + $0x28] sm:$0xff]
    %v145 = vld [vmem:[#allocation6 + $0x30] sm:$0xff]
    %v146 = vld [vmem:[#allocation6 + $0x38] sm:$0xff]
    %v147 = vld [vmem:[%s4] sm:$0x1]
    %v149 = vlaneseq
    %v150 = vshrl.u32 %v149, 7
    %v151 = vsub.s32 0, %v150
    %v152 = vrot.slane %v147, %v151
    %vm154 = vcmask 523264
    %v156 = vsel %vm154, %v138, 0
    %158 = vmatprep.subr.mxu0 0.0
    %159 = vmatpush1.msra.mxu0 %v139
    %160 = vmatprep.subr.mxu0 0.0
    %161 = vmatpush1.msra.mxu0 %v140
    %162 = vmatprep.subr.mxu0 0.0
    %163 = vmatpush1.msra.mxu0 %v141
    %164 = vmatprep.subr.mxu0 0.0
    %165 = vmatpush1.msra.mxu0 %v142
    %166 = vmatprep.subr.mxu0 0.0
    %167 = vmatpush1.msra.mxu0 %v143
    %168 = vmatprep.subr.mxu0 0.0
    %169 = vmatpush1.msra.mxu0 %v144
    %170 = vmatprep.subr.mxu0 0.0
    %171 = vmatpush1.msra.mxu0 %v145
    %172 = vmatprep.subr.mxu0 0.0
    %173 = vmatpush1.msra.mxu0 %v146
    %174 = vmatprep.subr.mxu0 0.0
    %175 = vmatpush1.msra.mxu0 0.0
    %176 = vmatprep.subr.mxu0 0.0
    %177 = vmatpush1.msra.mxu0 0.0
    %178 = vmatprep.subr.mxu0 0.0
    %179 = vmatpush1.msra.mxu0 0.0
    %180 = vmatprep.subr.mxu0 0.0
    %181 = vmatpush1.msra.mxu0 0.0
    %182 = vmatprep.subr.mxu0 0.0
    %183 = vmatpush1.msra.mxu0 0.0
    %184 = vmatprep.subr.mxu0 0.0
    %185 = vmatpush1.msra.mxu0 0.0
    %186 = vmatprep.subr.mxu0 0.0
    %187 = vmatpush1.msra.mxu0 0.0
    %188 = vmatprep.subr.mxu0 0.0
    %189 = vmatpush1.msra.mxu0 0.0
    %190 = vmatprep.subr.mxu0 0.0
    %191 = vmatpush1.msra.mxu0 0.0
    %192 = vmatprep.subr.mxu0 0.0
    %193 = vmatpush1.msra.mxu0 0.0
    %194 = vmatprep.subr.mxu0 0.0
    %195 = vmatpush1.msra.mxu0 0.0
    %196 = vmatprep.subr.mxu0 0.0
    %197 = vmatpush1.msra.mxu0 0.0
    %198 = vmatprep.subr.mxu0 0.0
    %199 = vmatpush1.msra.mxu0 0.0
    %200 = vmatprep.subr.mxu0 0.0
    %201 = vmatpush1.msra.mxu0 0.0
    %202 = vmatprep.subr.mxu0 0.0
    %203 = vmatpush1.msra.mxu0 0.0
    %204 = vmatprep.subr.mxu0 0.0
    %205 = vmatpush1.msra.mxu0 0.0
    %206 = vmatprep.subr.mxu0 0.0
    %207 = vmatpush1.msra.mxu0 0.0
    %208 = vmatprep.subr.mxu0 0.0
    %209 = vmatpush1.msra.mxu0 0.0
    %210 = vmatprep.subr.mxu0 0.0
    %211 = vmatpush1.msra.mxu0 0.0
    %212 = vmatprep.subr.mxu0 0.0
    %213 = vmatpush1.msra.mxu0 0.0
    %214 = vmatprep.subr.mxu0 0.0
    %215 = vmatpush1.msra.mxu0 0.0
    %216 = vmatprep.subr.mxu0 0.0
    %217 = vmatpush1.msra.mxu0 0.0
    %218 = vmatprep.subr.mxu0 0.0
    %219 = vmatpush1.msra.mxu0 0.0
    %220 = vmatprep.subr.mxu0 0.0
    %221 = vmatpush1.msra.mxu0 0.0
    %222 = vmatprep.mubr.f32.mxu0 0.0
    %223 = vmatmul.mubr.f32.gmra.mrb[0].mxu0 %v156
    %v224 = vpop.f32.mrb[0].mxu0
    %v225 = vadd.f32 %v152, %v224
    %v226 = vpop.f32.mrb[0].mxu0
    %227 = vdwg.mxu0
    %v228 = vtanh.pop %v225
    %v229 = vld [vmem:[%s5] sm:$0x1]
    %v230 = vld [vmem:[#allocation2] sm:$0x1]
    %232 = vset.pattern.permute.xlu0 0
    %233 = vperm.xlu0 %232, %v230
    %v234 = vpop.permute.xlu0 %233
    %v236 = vlaneseq
    %v237 = vshrl.u32 %v236, 7
    %v238 = vsub.s32 0, %v237
    %v239 = vrot.slane %v234, %v238
    %v241 = vsel %vm154, %v229, 0
    %v244 = vsel %vm154, %v228, 0
    %246 = vmatprep.subr.mxu0 0.0
    %247 = vmatpush1.xpose.msra.mxu0 %v244
    %248 = vmatprep.subr.mxu0 0.0
    %249 = vmatpush1.xpose.msra.mxu0 0.0
    %250 = vmatprep.subr.mxu0 0.0
    %251 = vmatpush1.xpose.msra.mxu0 0.0
    %252 = vmatprep.subr.mxu0 0.0
    %253 = vmatpush1.xpose.msra.mxu0 0.0
    %254 = vmatprep.subr.mxu0 0.0
    %255 = vmatpush1.xpose.msra.mxu0 0.0
    %256 = vmatprep.subr.mxu0 0.0
    %257 = vmatpush1.xpose.msra.mxu0 0.0
    %258 = vmatprep.subr.mxu0 0.0
    %259 = vmatpush1.xpose.msra.mxu0 0.0
    %260 = vmatprep.subr.mxu0 0.0
    %261 = vmatpush1.xpose.msra.mxu0 0.0
    %262 = vmatprep.subr.mxu0 0.0
    %263 = vmatpush1.xpose.msra.mxu0 0.0
    %264 = vmatprep.subr.mxu0 0.0
    %265 = vmatpush1.xpose.msra.mxu0 0.0
    %266 = vmatprep.subr.mxu0 0.0
    %267 = vmatpush1.xpose.msra.mxu0 0.0
    %268 = vmatprep.subr.mxu0 0.0
    %269 = vmatpush1.xpose.msra.mxu0 0.0
    %270 = vmatprep.subr.mxu0 0.0
    %271 = vmatpush1.xpose.msra.mxu0 0.0
    %272 = vmatprep.subr.mxu0 0.0
    %273 = vmatpush1.xpose.msra.mxu0 0.0
    %274 = vmatprep.subr.mxu0 0.0
    %275 = vmatpush1.xpose.msra.mxu0 0.0
    %276 = vmatprep.subr.mxu0 0.0
    %277 = vmatpush1.xpose.msra.mxu0 0.0
    %278 = vmatprep.subr.mxu0 0.0
    %279 = vmatpush1.xpose.msra.mxu0 0.0
    %280 = vmatprep.subr.mxu0 0.0
    %281 = vmatpush1.xpose.msra.mxu0 0.0
    %282 = vmatprep.subr.mxu0 0.0
    %283 = vmatpush1.xpose.msra.mxu0 0.0
    %284 = vmatprep.subr.mxu0 0.0
    %285 = vmatpush1.xpose.msra.mxu0 0.0
    %286 = vmatprep.subr.mxu0 0.0
    %287 = vmatpush1.xpose.msra.mxu0 0.0
    %288 = vmatprep.subr.mxu0 0.0
    %289 = vmatpush1.xpose.msra.mxu0 0.0
    %290 = vmatprep.subr.mxu0 0.0
    %291 = vmatpush1.xpose.msra.mxu0 0.0
    %292 = vmatprep.subr.mxu0 0.0
    %293 = vmatpush1.xpose.msra.mxu0 0.0
    %294 = vmatprep.subr.mxu0 0.0
    %295 = vmatpush1.xpose.msra.mxu0 0.0
    %296 = vmatprep.subr.mxu0 0.0
    %297 = vmatpush1.xpose.msra.mxu0 0.0
    %298 = vmatprep.subr.mxu0 0.0
    %299 = vmatpush1.xpose.msra.mxu0 0.0
    %300 = vmatprep.subr.mxu0 0.0
    %301 = vmatpush1.xpose.msra.mxu0 0.0
    %302 = vmatprep.subr.mxu0 0.0
    %303 = vmatpush1.xpose.msra.mxu0 0.0
    %304 = vmatprep.subr.mxu0 0.0
    %305 = vmatpush1.xpose.msra.mxu0 0.0
    %306 = vmatprep.subr.mxu0 0.0
    %307 = vmatpush1.xpose.msra.mxu0 0.0
    %308 = vmatprep.subr.mxu0 0.0
    %309 = vmatpush1.xpose.msra.mxu0 0.0
    %310 = vmatprep.mubr.f32.mxu0 0.0
    %311 = vmatmul.mubr.f32.gmra.mrb[0].mxu0 %v241
    %v312 = vpop.f32.mrb[0].mxu0
    %v313 = vadd.f32 %v239, %v312
    %v314 = vpop.f32.mrb[0].mxu0
    %315 = vdwg.mxu0
    %vm316 = vcmask 57344
    %317 = vst.msk [vmem:[#allocation8] sm:$0x1] %vm316, %v313
    // Predicated region
    $region38: #{critic_forward.1} parent=1 // pred_check
      _
    $region39: #{critic_forward.1} parent=1 // pred_check_branch
      %319 = sbr.rel (0) target = $region41
    $region40: #{critic_forward.1} parent=1 // pred_region
      %s321 = ssub.s32 16, 16
      %322 = vsyncadd [#allocation5], %s321
      %s324 = sshll.u32 [#allocation8], 4
      %s325 = int_to_ptr.vmem [resolvable:$true] %s324
      %327 = dma.vmem_to_hbm [thread:$0]  %s325, 16, %s7, [#allocation5]
    $region41: #{critic_forward.1} parent=1 // pred_fallthru
      _
    // Predicated region
    $region42: #{critic_forward.1} parent=1 // pred_check
      _
    $region43: #{critic_forward.1} parent=1 // pred_check_branch
      %329 = sbr.rel (0) target = $region45
    $region44: #{critic_forward.1} parent=1 // pred_region
      %330 = dma.done [#allocation5], 16
    $region45: #{critic_forward.1} parent=1 // pred_fallthru
      _
    %331 = vsyncpa [#allocation4], 1
    %332 = vsyncpa [#allocation7], 1
    %333 = vsyncpa [#allocation5], 1

</llo_original>
